<compile_context>
chip_gen: v7x
topology: tpu7x:2x2x1
jax: 0.10.0
libtpu: 0.0.40
codegen_flags: <defaults>
</compile_context>

<pallas_src>
import jax
import jax.numpy as jnp
from jax.experimental import pallas as pl
from jax.experimental.pallas import tpu as pltpu


def _round_up(x, m):
    return ((x + m - 1) // m) * m


def _max_channel_attention_kernel(x_ref, wt_ref, b_ref, o_ref, acc_ref):
    # x_ref  : (tn, C, t_hw)   current streaming block of the flattened input
    # wt_ref : (C_in, C_out)   1x1 conv weight, pre-transposed, resident
    # b_ref  : (1, C_out)      bias, resident
    # o_ref  : (tn, C_out)     output block (resident across the HW axis)
    # acc_ref: (tn, C, t_hw)   running elementwise-max accumulator (VMEM scratch)
    s = pl.program_id(1)

    @pl.when(s == 0)
    def _init():
        acc_ref[...] = jnp.full_like(acc_ref, jnp.finfo(acc_ref.dtype).min)

    # Per-step work: pure VPU elementwise max (no cross-lane reduce per tile).
    acc_ref[...] = jnp.maximum(acc_ref[...], x_ref[...])

    @pl.when(s == pl.num_programs(1) - 1)
    def _finalize():
        # Single cross-lane reduce (XLU), then the tiny 1x1-conv matmul (MXU).
        pooled = jnp.max(acc_ref[...], axis=-1).astype(jnp.float32)   # (tn, C)
        out = jnp.dot(pooled, wt_ref[...], preferred_element_type=jnp.float32)
        o_ref[...] = (out + b_ref[...]).astype(o_ref.dtype)


def max_channel_attention_2d(x, weight, bias, *, lane_tile=512,
                             vmem_tile_budget_bytes=12 * 1024 * 1024):
    """x: (N, C, H, W) NCHW. weight: (C, C, 1, 1). bias: (C,). Returns (N, C, 1, 1)."""
    N, C, H, W = x.shape
    dtype = x.dtype
    HW = H * W
    itemsize = jnp.dtype(dtype).itemsize
    min_val = jnp.finfo(dtype).min

    # --- tile selection -----------------------------------------------------
    # Lane tile: multiple of 128 (or the full padded extent), capped.
    hw128 = _round_up(HW, 128)
    t_hw = min(hw128, lane_tile)
    HW_pad = _round_up(HW, t_hw)

    # Batch tile: keep 2x double-buffered x blocks + 1 accumulator under the
    # VMEM budget (conservative enough for v5e's 16 MiB scoped default and
    # v7x's 64 MiB physical VMEM).
    bytes_per_row_step = C * t_hw * itemsize
    max_tn = max(1, vmem_tile_budget_bytes // (3 * bytes_per_row_step))
    if N <= max_tn:
        tn = N                      # single/full-extent batch tile (always legal)
    else:
        tn = max(8, (max_tn // 8) * 8)
    N_pad = _round_up(N, tn)

    # --- host-side layout prep ----------------------------------------------
    x_flat = x.reshape(N, C, HW)
    pad_n, pad_hw = N_pad - N, HW_pad - HW
    if pad_n or pad_hw:
        # Pad with dtype-min so padded lanes/rows never win the max; padded
        # batch rows are sliced off after the call.
        x_flat = jnp.pad(x_flat, ((0, pad_n), (0, 0), (0, pad_hw)),
                         constant_values=min_val)

    wt = weight.reshape(C, C).T.astype(jnp.float32)   # (C_in, C_out)
    b = bias.reshape(1, C).astype(jnp.float32)

    grid = (N_pad // tn, HW_pad // t_hw)

    out = pl.pallas_call(
        _max_channel_attention_kernel,
        out_shape=jax.ShapeDtypeStruct((N_pad, C), dtype),
        grid_spec=pltpu.PrefetchScalarGridSpec(
            num_scalar_prefetch=0,
            grid=grid,
            in_specs=[
                pl.BlockSpec((tn, C, t_hw), lambda i, s: (i, 0, s)),
                pl.BlockSpec((C, C), lambda i, s: (0, 0)),   # resident weight
                pl.BlockSpec((1, C), lambda i, s: (0, 0)),   # resident bias
            ],
            out_specs=pl.BlockSpec((tn, C), lambda i, s: (i, 0)),
            scratch_shapes=[pltpu.VMEM((tn, C, t_hw), dtype)],
        ),
        compiler_params=pltpu.CompilerParams(
            dimension_semantics=("parallel", "arbitrary"),
            vmem_limit_bytes=32 * 1024 * 1024,
        ),
        cost_estimate=pl.CostEstimate(
            flops=N * C * HW + 2 * N * C * C,
            transcendentals=0,
            bytes_accessed=N * C * HW * itemsize + C * C * 4 + N * C * itemsize,
        ),
    )(x_flat, wt, b)

    return out[:N].reshape(N, C, 1, 1)


def _reference(x, weight, bias):
    pooled = jnp.max(x, axis=(2, 3))                           # (N, C)
    w2d = weight.reshape(weight.shape[0], weight.shape[1])     # (C_out, C_in)
    y = pooled @ w2d.T + bias[None, :]
    return y[:, :, None, None]


if __name__ == "__main__":
    key = jax.random.PRNGKey(0)
    kx, kw, kb = jax.random.split(key, 3)

    N, C, H, W = 2, 4, 16, 16
    x = jax.random.normal(kx, (N, C, H, W), dtype=jnp.float32)

    # Conv2d(dim, dim, kernel_size=1, bias=True) parameters:
    # weight (C, C, 1, 1), bias (C,), uniform in [-1/sqrt(C), 1/sqrt(C)].
    bound = 1.0 / (C ** 0.5)
    weight = jax.random.uniform(kw, (C, C, 1, 1), dtype=jnp.float32,
                                minval=-bound, maxval=bound)
    bias = jax.random.uniform(kb, (C,), dtype=jnp.float32,
                              minval=-bound, maxval=bound)

    y = max_channel_attention_2d(x, weight, bias)
    y = jax.block_until_ready(y)

    y_ref = _reference(x, weight, bias)
    assert y.shape == (N, C, 1, 1)
    assert jnp.allclose(y, y_ref, atol=1e-5, rtol=1e-5)

    print("KERNEL_OK")
</pallas_src>

<mosaic_0001>
module attributes {stable_mosaic.version = 11 : i64} {
  func.func @_max_channel_attention_kernel(%arg0: i32, %arg1: i32, %arg2: memref<2x4x256xf32, #tpu.memory_space<vmem>>, %arg3: memref<4x4xf32, #tpu.memory_space<vmem>>, %arg4: memref<1x4xf32, #tpu.memory_space<vmem>>, %arg5: memref<2x4xf32, #tpu.memory_space<vmem>>, %arg6: memref<2x4x256xf32, #tpu.memory_space<vmem>>) attributes {dimension_semantics = [#tpu.dimension_semantics<parallel>, #tpu.dimension_semantics<arbitrary>], iteration_bounds = array<i64: 1, 1>, scalar_prefetch = 0 : i64, scratch_operands = 1 : i64, tpu.core_type = #tpu.core_type<tc>, window_params = [{transform_indices = @transform_0, window_bounds = array<i64: 2, 4, 256>}, {pipeline_mode = #tpu.pipeline_mode<synchronous>, transform_indices = @transform_1, window_bounds = array<i64: 4, 4>}, {pipeline_mode = #tpu.pipeline_mode<synchronous>, transform_indices = @transform_2, window_bounds = array<i64: 1, 4>}, {transform_indices = @transform_3, window_bounds = array<i64: 2, 4>}]} {
    %c0_i32 = arith.constant 0 : i32
    %0 = arith.cmpi eq, %arg1, %c0_i32 : i32
    %1 = arith.extui %0 : i1 to i32
    %c0_i32_0 = arith.constant 0 : i32
    %2 = arith.cmpi ne, %1, %c0_i32_0 : i32
    scf.if %2 {
      %cst = arith.constant -3.40282347E+38 : f32
      %10 = vector.broadcast %cst : f32 to vector<2x4x256xf32>
      %c0_11 = arith.constant 0 : index
      %c0_12 = arith.constant 0 : index
      %c0_13 = arith.constant 0 : index
      %11 = vector.load %arg6[%c0_11, %c0_12, %c0_13] : memref<2x4x256xf32, #tpu.memory_space<vmem>>, vector<2x4x256xf32>
      tpu.vector_store %arg6[%c0_11, %c0_12, %c0_13], %10 {strides = array<i32>} : memref<2x4x256xf32, #tpu.memory_space<vmem>>, vector<2x4x256xf32>,
    } else {
    }
    %c0 = arith.constant 0 : index
    %c0_1 = arith.constant 0 : index
    %c0_2 = arith.constant 0 : index
    %3 = vector.load %arg6[%c0, %c0_1, %c0_2] : memref<2x4x256xf32, #tpu.memory_space<vmem>>, vector<2x4x256xf32>
    %c0_3 = arith.constant 0 : index
    %c0_4 = arith.constant 0 : index
    %c0_5 = arith.constant 0 : index
    %4 = vector.load %arg2[%c0_3, %c0_4, %c0_5] : memref<2x4x256xf32, #tpu.memory_space<vmem>>, vector<2x4x256xf32>
    %5 = arith.maximumf %3, %4 : vector<2x4x256xf32>
    %c0_6 = arith.constant 0 : index
    %c0_7 = arith.constant 0 : index
    %c0_8 = arith.constant 0 : index
    %6 = vector.load %arg6[%c0_6, %c0_7, %c0_8] : memref<2x4x256xf32, #tpu.memory_space<vmem>>, vector<2x4x256xf32>
    tpu.vector_store %arg6[%c0_6, %c0_7, %c0_8], %5 {strides = array<i32>} : memref<2x4x256xf32, #tpu.memory_space<vmem>>, vector<2x4x256xf32>,
    %c0_i32_9 = arith.constant 0 : i32
    %7 = arith.cmpi eq, %arg1, %c0_i32_9 : i32
    %8 = arith.extui %7 : i1 to i32
    %c0_i32_10 = arith.constant 0 : i32
    %9 = arith.cmpi ne, %8, %c0_i32_10 : i32
    scf.if %9 {
      %c0_11 = arith.constant 0 : index
      %c0_12 = arith.constant 0 : index
      %c0_13 = arith.constant 0 : index
      %10 = vector.load %arg6[%c0_11, %c0_12, %c0_13] : memref<2x4x256xf32, #tpu.memory_space<vmem>>, vector<2x4x256xf32>
      %cst = arith.constant dense<0xFF800000> : vector<2x4xf32>
      %11 = vector.multi_reduction <maximumf>, %10, %cst [2] : vector<2x4x256xf32> to vector<2x4xf32>
      %c0_14 = arith.constant 0 : index
      %c0_15 = arith.constant 0 : index
      %12 = vector.load %arg3[%c0_14, %c0_15] : memref<4x4xf32, #tpu.memory_space<vmem>>, vector<4x4xf32>
      %cst_16 = arith.constant dense<0.000000e+00> : vector<2x4xf32>
      %13 = tpu.matmul %11, %12, %cst_16 {dimension_numbers = #tpu.dot_dimension_numbers<[1], [0], [0], [1], [0, 0, 1, 1], [], []>} : vector<2x4xf32>, vector<4x4xf32>, vector<2x4xf32> -> vector<2x4xf32>
      %c0_17 = arith.constant 0 : index
      %c0_18 = arith.constant 0 : index
      %14 = vector.load %arg4[%c0_17, %c0_18] : memref<1x4xf32, #tpu.memory_space<vmem>>, vector<1x4xf32>
      %15 = vector.broadcast %14 : vector<1x4xf32> to vector<2x4xf32>
      %16 = arith.addf %13, %15 : vector<2x4xf32>
      %c0_19 = arith.constant 0 : index
      %c0_20 = arith.constant 0 : index
      %17 = vector.load %arg5[%c0_19, %c0_20] : memref<2x4xf32, #tpu.memory_space<vmem>>, vector<2x4xf32>
      tpu.vector_store %arg5[%c0_19, %c0_20], %16 {strides = array<i32>} : memref<2x4xf32, #tpu.memory_space<vmem>>, vector<2x4xf32>,
    } else {
    }
    return
  }
  func.func @transform_0(%arg0: i32, %arg1: i32) -> (i32, i32, i32) {
    %c0_i32 = arith.constant 0 : i32
    %c0_i32_0 = arith.constant 0 : i32
    return %arg0, %c0_i32, %arg1 : i32, i32, i32
  }
  func.func @transform_1(%arg0: i32, %arg1: i32) -> (i32, i32) {
    %c0_i32 = arith.constant 0 : i32
    %c0_i32_0 = arith.constant 0 : i32
    %c0_i32_1 = arith.constant 0 : i32
    return %c0_i32, %c0_i32_0 : i32, i32
  }
  func.func @transform_2(%arg0: i32, %arg1: i32) -> (i32, i32) {
    %c0_i32 = arith.constant 0 : i32
    %c0_i32_0 = arith.constant 0 : i32
    %c0_i32_1 = arith.constant 0 : i32
    return %c0_i32, %c0_i32_0 : i32, i32
  }
  func.func @transform_3(%arg0: i32, %arg1: i32) -> (i32, i32) {
    %c0_i32 = arith.constant 0 : i32
    %c0_i32_0 = arith.constant 0 : i32
    return %arg0, %c0_i32 : i32, i32
  }
}

</mosaic_0001>

<llo_original>
// kernel: tpu_custom_call.1
$region0: #{tpu_custom_call.1}
  #allocation0 [shape = 'u32[]', space=smem, size = 0x4, offset = 0x4, fixed_abs, tag = 'smem constant byte address 0x4 - core index']
  #allocation1 [shape = 'u32[144,128]{1,0:T(1,128)}', space=vmem, size = 0x12000, scoped, tag = 'internal scratch']
  #allocation2 [shape = 'f32[2,4,256]{2,1,0:T(4,128)}', space=vmem, size = 0x2000, scoped, tag = 'scratch operand']
  %s0 = inlined_call_operand.hbm [shape: f32[2,4,256], index: 0, kind: input, shape index: {}]
  %s1 = inlined_call_operand.hbm [shape: f32[4,4], index: 1, kind: input, shape index: {}]
  %s2 = inlined_call_operand.vmem [shape: f32[1,4], index: 2, kind: input, shape index: {}]
  %s3 = inlined_call_operand.hbm [shape: f32[2,4], index: 3, kind: output, shape index: {}]
  %s4 = sld [smem:[#allocation0]]
  $region38: #{tpu_custom_call.1} parent=0
    _
  %s6 = ssub.s32 1, %s4
  %s7 = scalar_select 0, %s6, %s4
  $region1: #{tpu_custom_call.1} parent=0
    #allocation3 [shape = 'u8[8192]{0}', space=vmem, size = 0x2000, scoped, tag = 'input window, operand 0, single buffered']
    #allocation4 [shape = 's32[1]{0}', space=sflag, size = 0x4, scoped, tag = 'scoped memory for tpu_custom_call.1']
    #allocation5 [shape = 's32[1]{0}', space=sflag, size = 0x4, scoped, tag = 'scoped memory for tpu_custom_call.1']
    #allocation6 [shape = 'u8[2048]{0}', space=vmem, size = 0x800, scoped, tag = 'input window, operand 1, single buffered']
    #allocation7 [shape = 's32[1]{0}', space=sflag, size = 0x4, scoped, tag = 'scoped memory for tpu_custom_call.1']
    #allocation8 [shape = 'u8[1024]{0}', space=vmem, size = 0x400, scoped, tag = 'output window, operand 0, single buffered']
    %8 = vsyncpa [#allocation4], 0
    %9 = vsyncpa [#allocation7], 0
    %10 = vsyncpa [#allocation5], 0
    // Predicated region
    $region2: #{tpu_custom_call.1} parent=1 // pred_check
      _
    $region3: #{tpu_custom_call.1} parent=1 // pred_check_branch
      %12 = sbr.rel (0) target = $region5
    $region4: #{tpu_custom_call.1} parent=1 // pred_region
      %s14 = ssub.s32 256, 256
      %15 = vsyncadd [#allocation4], %s14
      %s16 = sshll.u32 [#allocation3], 4
      %s17 = int_to_ptr.vmem [resolvable:$true] %s16
      %22 = dma.hbm_to_vmem [thread:$0]  %s0, 256, %s17, [#allocation4], 128, 128, 8
    $region5: #{tpu_custom_call.1} parent=1 // pred_fallthru
      _
    // Predicated region
    $region6: #{tpu_custom_call.1} parent=1 // pred_check
      _
    $region7: #{tpu_custom_call.1} parent=1 // pred_check_branch
      %24 = sbr.rel (0) target = $region9
    $region8: #{tpu_custom_call.1} parent=1 // pred_region
      %s26 = ssub.s32 64, 64
      %27 = vsyncadd [#allocation7], %s26
      %s29 = sshll.u32 [#allocation6], 4
      %s30 = int_to_ptr.vmem [resolvable:$true] %s29
      %32 = dma.hbm_to_vmem [thread:$0]  %s1, 64, %s30, [#allocation7]
    $region9: #{tpu_custom_call.1} parent=1 // pred_fallthru
      _
    // Predicated region
    $region10: #{tpu_custom_call.1} parent=1 // pred_check
      _
    $region11: #{tpu_custom_call.1} parent=1 // pred_check_branch
      %34 = sbr.rel (0) target = $region13
    $region12: #{tpu_custom_call.1} parent=1 // pred_region
      _
    $region13: #{tpu_custom_call.1} parent=1 // pred_fallthru
      _
    // Predicated region
    $region14: #{tpu_custom_call.1} parent=1 // pred_check
      _
    $region15: #{tpu_custom_call.1} parent=1 // pred_check_branch
      %36 = sbr.rel (0) target = $region17
    $region16: #{tpu_custom_call.1} parent=1 // pred_region
      %37 = dma.done [#allocation4], 256
    $region17: #{tpu_custom_call.1} parent=1 // pred_fallthru
      _
    // Predicated region
    $region18: #{tpu_custom_call.1} parent=1 // pred_check
      _
    $region19: #{tpu_custom_call.1} parent=1 // pred_check_branch
      %39 = sbr.rel (0) target = $region21
    $region20: #{tpu_custom_call.1} parent=1 // pred_region
      %40 = dma.done [#allocation7], 64
    $region21: #{tpu_custom_call.1} parent=1 // pred_fallthru
      _
    %p41 = scmp.eq.s32.totalorder 0, 0
    // Predicated region
    $region22: #{tpu_custom_call.1} parent=1 // pred_check
      %p42 = pneg %p41
    $region23: #{tpu_custom_call.1} parent=1 // pred_check_branch
      %44 = sbr.rel (%p42) target = $region25
    $region24: #{tpu_custom_call.1} parent=1 // pred_region
      %45 = vst [vmem:[#allocation2] sm:$0xff] -3.4028235e+38
      %46 = vst [vmem:[#allocation2 + $0x8] sm:$0xff] -3.4028235e+38
    $region25: #{tpu_custom_call.1} parent=1 // pred_fallthru
      _
    %v47 = vld [vmem:[#allocation2] sm:$0xff]
    %v48 = vld [vmem:[#allocation2 + $0x8] sm:$0xff]
    %v49 = vld [vmem:[#allocation3] sm:$0xff]
    %v50 = vld [vmem:[#allocation3 + $0x8] sm:$0xff]
    %v51 = vmax.f32 %v47, %v49
    %v52 = vmax.f32 %v48, %v50
    %53 = vst [vmem:[#allocation2] sm:$0xff] %v51
    %54 = vst [vmem:[#allocation2 + $0x8] sm:$0xff] %v52
    // Predicated region
    $region26: #{tpu_custom_call.1} parent=1 // pred_check
      %p55 = pneg %p41
    $region27: #{tpu_custom_call.1} parent=1 // pred_check_branch
      %57 = sbr.rel (%p55) target = $region29
    $region28: #{tpu_custom_call.1} parent=1 // pred_region
      %v58 = vld [vmem:[#allocation2] sm:$0xff]
      %v59 = vld [vmem:[#allocation2 + $0x8] sm:$0xff]
      %v62 = vcombine.high %v58, %v58
      %v63 = vcombine.high %v59, %v59
      %vm66 = vcmask 1043456
      %v67 = vsel %vm66, %v58, -inf
      %v68 = vsel %vm66, %v62, -inf
      %v69 = vmax.f32 %v67, %v68
      %70 = vmax.xlane.f32.xlu0 %v69
      %v71 = vpop.xlane.xlu0 %70
      %v72 = vsel %vm66, %v59, -inf
      %v73 = vsel %vm66, %v63, -inf
      %v74 = vmax.f32 %v72, %v73
      %75 = vmax.xlane.f32.xlu0 %v74
      %v76 = vpop.xlane.xlu0 %75
      %v77 = vld [vmem:[#allocation6] sm:$0xf]
      %v78 = vld [vmem:[%s2] sm:$0x1]
      %v80 = vlaneseq
      %v81 = vshrl.u32 %v80, 7
      %v82 = vsub.s32 0, %v81
      %v83 = vrot.slane %v78, %v82
      %v87 = vlaneseq
      %v88 = vand.u32 %v87, 127
      %v89 = vlaneseq
      %v90 = vshrl.u32 %v89, 7
      %v91 = vsub.s32 %v88, %v90
      %v92 = vrot.slane %v71, %v91
      %v93 = vlaneseq
      %v94 = vshrl.u32 %v93, 7
      %v95 = vsub.s32 %v88, %v94
      %v96 = vrot.slane %v76, %v95
      %vm97 = vcmask 1041409
      %v98 = vsel %vm97, %v96, %v92
      %vm99 = vcmask 31744
      %v100 = vsel %vm99, %v98, 0
      %v103 = vsel %vm66, %v77, 0
      %105 = vmatprep.subr.mxu0 0.0
      %106 = vmatpush1.msra.mxu0 %v103
      %107 = vmatprep.subr.mxu0 0.0
      %108 = vmatpush1.msra.mxu0 0.0
      %109 = vmatprep.subr.mxu0 0.0
      %110 = vmatpush1.msra.mxu0 0.0
      %111 = vmatprep.subr.mxu0 0.0
      %112 = vmatpush1.msra.mxu0 0.0
      %113 = vmatprep.subr.mxu0 0.0
      %114 = vmatpush1.msra.mxu0 0.0
      %115 = vmatprep.subr.mxu0 0.0
      %116 = vmatpush1.msra.mxu0 0.0
      %117 = vmatprep.subr.mxu0 0.0
      %118 = vmatpush1.msra.mxu0 0.0
      %119 = vmatprep.subr.mxu0 0.0
      %120 = vmatpush1.msra.mxu0 0.0
      %121 = vmatprep.subr.mxu0 0.0
      %122 = vmatpush1.msra.mxu0 0.0
      %123 = vmatprep.subr.mxu0 0.0
      %124 = vmatpush1.msra.mxu0 0.0
      %125 = vmatprep.subr.mxu0 0.0
      %126 = vmatpush1.msra.mxu0 0.0
      %127 = vmatprep.subr.mxu0 0.0
      %128 = vmatpush1.msra.mxu0 0.0
      %129 = vmatprep.subr.mxu0 0.0
      %130 = vmatpush1.msra.mxu0 0.0
      %131 = vmatprep.subr.mxu0 0.0
      %132 = vmatpush1.msra.mxu0 0.0
      %133 = vmatprep.subr.mxu0 0.0
      %134 = vmatpush1.msra.mxu0 0.0
      %135 = vmatprep.subr.mxu0 0.0
      %136 = vmatpush1.msra.mxu0 0.0
      %137 = vmatprep.subr.mxu0 0.0
      %138 = vmatpush1.msra.mxu0 0.0
      %139 = vmatprep.subr.mxu0 0.0
      %140 = vmatpush1.msra.mxu0 0.0
      %141 = vmatprep.subr.mxu0 0.0
      %142 = vmatpush1.msra.mxu0 0.0
      %143 = vmatprep.subr.mxu0 0.0
      %144 = vmatpush1.msra.mxu0 0.0
      %145 = vmatprep.subr.mxu0 0.0
      %146 = vmatpush1.msra.mxu0 0.0
      %147 = vmatprep.subr.mxu0 0.0
      %148 = vmatpush1.msra.mxu0 0.0
      %149 = vmatprep.subr.mxu0 0.0
      %150 = vmatpush1.msra.mxu0 0.0
      %151 = vmatprep.subr.mxu0 0.0
      %152 = vmatpush1.msra.mxu0 0.0
      %153 = vmatprep.subr.mxu0 0.0
      %154 = vmatpush1.msra.mxu0 0.0
      %155 = vmatprep.subr.mxu0 0.0
      %156 = vmatpush1.msra.mxu0 0.0
      %157 = vmatprep.subr.mxu0 0.0
      %158 = vmatpush1.msra.mxu0 0.0
      %159 = vmatprep.subr.mxu0 0.0
      %160 = vmatpush1.msra.mxu0 0.0
      %161 = vmatprep.subr.mxu0 0.0
      %162 = vmatpush1.msra.mxu0 0.0
      %163 = vmatprep.subr.mxu0 0.0
      %164 = vmatpush1.msra.mxu0 0.0
      %165 = vmatprep.subr.mxu0 0.0
      %166 = vmatpush1.msra.mxu0 0.0
      %167 = vmatprep.subr.mxu0 0.0
      %168 = vmatpush1.msra.mxu0 0.0
      %169 = vmatprep.mubr.f32.mxu0 0.0
      %170 = vmatmul.mubr.f32.gmra.mrb[0].mxu0 %v100
      %v171 = vpop.f32.mrb[0].mxu0
      %v172 = vadd.f32 %v83, %v171
      %v173 = vpop.f32.mrb[0].mxu0
      %174 = vdwg.mxu0
      %vm175 = vcmask 25600
      %176 = vst.msk [vmem:[#allocation8] sm:$0x3] %vm175, %v172
    $region29: #{tpu_custom_call.1} parent=1 // pred_fallthru
      _
    // Predicated region
    $region30: #{tpu_custom_call.1} parent=1 // pred_check
      _
    $region31: #{tpu_custom_call.1} parent=1 // pred_check_branch
      %178 = sbr.rel (0) target = $region33
    $region32: #{tpu_custom_call.1} parent=1 // pred_region
      %s180 = ssub.s32 32, 32
      %181 = vsyncadd [#allocation5], %s180
      %s183 = sshll.u32 [#allocation8], 4
      %s184 = int_to_ptr.vmem [resolvable:$true] %s183
      %186 = dma.vmem_to_hbm [thread:$0]  %s184, 32, %s3, [#allocation5]
    $region33: #{tpu_custom_call.1} parent=1 // pred_fallthru
      _
    // Predicated region
    $region34: #{tpu_custom_call.1} parent=1 // pred_check
      _
    $region35: #{tpu_custom_call.1} parent=1 // pred_check_branch
      %188 = sbr.rel (0) target = $region37
    $region36: #{tpu_custom_call.1} parent=1 // pred_region
      %189 = dma.done [#allocation5], 32
    $region37: #{tpu_custom_call.1} parent=1 // pred_fallthru
      _
    %190 = vsyncpa [#allocation4], 1
    %191 = vsyncpa [#allocation7], 1
    %192 = vsyncpa [#allocation5], 1

</llo_original>
